<compile_context>
chip_gen: v7x
topology: tpu7x:2x2x1
jax: 0.10.0
libtpu: 0.0.40
codegen_flags: <defaults>
</compile_context>

<pallas_src>
import functools

import jax
import jax.numpy as jnp
from jax.experimental import pallas as pl
from jax.experimental.pallas import tpu as pltpu

EPS = 1e-5


# ----------------------------------------------------------------------------- #
# Sizing helpers
# ----------------------------------------------------------------------------- #
def _vmem_budgets():
    """(tile_budget_bytes, vmem_limit_bytes) sized for this TPU generation."""
    cap = None
    try:
        cap = getattr(pltpu.get_tpu_info(), "vmem_capacity_bytes", None)
    except Exception:  # noqa: BLE001  (query can fail off-TPU / interpret mode)
        cap = None
    if cap is None:
        cap = 64 << 20                       # conservative: assume v7x-sized VMEM
    if cap >= (128 << 20):                   # v5e / v6e (128 MiB physical)
        return 88 << 20, 100 << 20
    return 40 << 20, 56 << 20                # v7x (64 MiB physical)


def _cdiv(a, b):
    return -(-a // b)


def _pick_channel_tile(C, HW, tile_budget):
    """Largest channel tile whose ~5 live f32 tiles fit the budget.

    5 tiles = double-buffered input + output (4) + ~1 tile of in-body headroom.
    Returns None when even a minimal legal tile does not fit -> use HW-tiled path.
    """
    bytes_per_channel = 20 * HW              # 5 tiles * HW * 4 B
    max_tc = tile_budget // bytes_per_channel
    if C <= max_tc:
        return C                             # full extent is always a legal block dim
    tc = (max_tc // 8) * 8                   # sublane (2nd-to-last) dim: multiple of 8
    return tc if tc >= 8 else None


def _pick_hw_tile(C, HW, tile_budget):
    """Spatial tile (multiple of 128 lanes) for the two-pass fallback."""
    tc = C if C <= 8 else 8
    max_thw = tile_budget // (20 * tc)
    thw = min(HW, (max_thw // 128) * 128)
    return max(thw, 128)


def _pad_params(weight, bias, C_pad):
    """(S, C) params -> (S, C_pad, 1) with C on the sublane axis (lane-broadcast)."""
    S, C = weight.shape
    if C_pad != C:
        pad = ((0, 0), (0, C_pad - C))
        weight = jnp.pad(weight, pad)
        bias = jnp.pad(bias, pad)
    return weight.reshape(S, C_pad, 1), bias.reshape(S, C_pad, 1)


def _slice_params(style_id_ref, w_ref, b_ref, tc, num_ct):
    """Select this batch element's style row and channel-tile from the resident params."""
    n = pl.program_id(0)
    sid = style_id_ref[n]
    if num_ct == 1:
        w = w_ref[sid]                                   # (tc, 1)
        b = b_ref[sid]
    else:
        # tc is a multiple of 8 whenever num_ct > 1, so the sublane start is aligned.
        c0 = pl.multiple_of(pl.program_id(1) * tc, tc)
        w = w_ref[sid, pl.ds(c0, tc), :]                 # (tc, 1)
        b = b_ref[sid, pl.ds(c0, tc), :]
    return w[None], b[None]                              # (1, tc, 1)


# ----------------------------------------------------------------------------- #
# Fused single-pass path (full H*W per grid step)
# ----------------------------------------------------------------------------- #
def _fused_kernel(tc, num_ct, style_id_ref, x_ref, w_ref, b_ref, o_ref):
    # x_ref: (1, tc, HW) lane-dense spatial axis; w_ref/b_ref: resident (S, C_pad, 1).
    w, b = _slice_params(style_id_ref, w_ref, b_ref, tc, num_ct)

    # Two-pass (centered) variance, but x is re-read from the input VMEM buffer at
    # every use instead of keeping a full-tile `centered` temporary live.
    mean = jnp.mean(x_ref[...].astype(jnp.float32), axis=-1, keepdims=True)
    var = jnp.mean(jnp.square(x_ref[...].astype(jnp.float32) - mean),
                   axis=-1, keepdims=True)                       # biased var
    scale = jax.lax.rsqrt(var + EPS) * w                         # (1, tc, 1)
    o_ref[...] = ((x_ref[...].astype(jnp.float32) - mean) * scale
                  + b).astype(o_ref.dtype)


def _fused_path(x2, style_id, weight, bias, tc, vmem_limit):
    N, C, HW = x2.shape
    S = weight.shape[0]
    num_ct = _cdiv(C, tc)
    C_pad = num_ct * tc
    w3, b3 = _pad_params(weight, bias, C_pad)

    cost = pl.CostEstimate(
        flops=8 * N * C * HW,
        transcendentals=N * C,
        bytes_accessed=(2 * N * C * HW + 2 * S * C_pad + N) * 4,
    )

    grid_spec = pltpu.PrefetchScalarGridSpec(
        num_scalar_prefetch=1,                   # style_id -> SMEM
        grid=(N, num_ct),
        in_specs=[
            pl.BlockSpec((1, tc, HW), lambda n, c, sid: (n, c, 0)),
            pl.BlockSpec((S, C_pad, 1), lambda n, c, sid: (0, 0, 0)),   # resident
            pl.BlockSpec((S, C_pad, 1), lambda n, c, sid: (0, 0, 0)),   # resident
        ],
        out_specs=pl.BlockSpec((1, tc, HW), lambda n, c, sid: (n, c, 0)),
    )

    return pl.pallas_call(
        functools.partial(_fused_kernel, tc, num_ct),
        out_shape=jax.ShapeDtypeStruct((N, C, HW), x2.dtype),
        grid_spec=grid_spec,
        compiler_params=pltpu.CompilerParams(
            dimension_semantics=("parallel", "parallel"),
            vmem_limit_bytes=vmem_limit,
        ),
        cost_estimate=cost,
    )(style_id, x2, w3, b3)


# ----------------------------------------------------------------------------- #
# Two-pass fallback (large H*W): tiled stats + tiled normalize
# ----------------------------------------------------------------------------- #
def _stats_kernel(HW, thw, x_ref, mean_ref, var_ref):
    h = pl.program_id(2)

    @pl.when(h == 0)
    def _():
        mean_ref[...] = jnp.zeros_like(mean_ref)
        var_ref[...] = jnp.zeros_like(var_ref)

    x = x_ref[...].astype(jnp.float32)                          # (1, tc, thw)
    # Mask the tail of a partial last HW tile so it does not pollute the sums.
    idx = h * thw + jax.lax.broadcasted_iota(jnp.int32, x.shape, 2)
    xv = jnp.where(idx < HW, x, 0.0)
    mean_ref[...] += jnp.sum(xv, axis=-1, keepdims=True)        # running sum
    var_ref[...] += jnp.sum(xv * xv, axis=-1, keepdims=True)    # running sum of squares

    @pl.when(h == pl.num_programs(2) - 1)
    def _():
        inv = 1.0 / HW
        m = mean_ref[...] * inv
        v = jnp.maximum(var_ref[...] * inv - m * m, 0.0)        # biased var, clamped
        mean_ref[...] = m
        var_ref[...] = v


def _norm_kernel(tc, num_ct, style_id_ref, x_ref, mean_ref, var_ref,
                 w_ref, b_ref, o_ref):
    w, b = _slice_params(style_id_ref, w_ref, b_ref, tc, num_ct)
    scale = jax.lax.rsqrt(var_ref[...] + EPS) * w               # (1, tc, 1)
    o_ref[...] = ((x_ref[...].astype(jnp.float32) - mean_ref[...]) * scale
                  + b).astype(o_ref.dtype)


def _two_pass_path(x2, style_id, weight, bias, thw, vmem_limit):
    N, C, HW = x2.shape
    S = weight.shape[0]
    tc = C if C <= 8 else 8
    num_ct = _cdiv(C, tc)
    num_ht = _cdiv(HW, thw)
    C_pad = num_ct * tc
    w3, b3 = _pad_params(weight, bias, C_pad)

    # Pass 1: per-(batch, channel) mean / variance accumulated over HW tiles.
    stats_cost = pl.CostEstimate(
        flops=3 * N * C * HW,
        transcendentals=0,
        bytes_accessed=(N * C * HW + 2 * N * C) * 4,
    )
    mean, var = pl.pallas_call(
        functools.partial(_stats_kernel, HW, thw),
        out_shape=(jax.ShapeDtypeStruct((N, C, 1), jnp.float32),
                   jax.ShapeDtypeStruct((N, C, 1), jnp.float32)),
        grid_spec=pltpu.PrefetchScalarGridSpec(
            num_scalar_prefetch=0,
            grid=(N, num_ct, num_ht),
            in_specs=[pl.BlockSpec((1, tc, thw), lambda n, c, h: (n, c, h))],
            out_specs=(pl.BlockSpec((1, tc, 1), lambda n, c, h: (n, c, 0)),
                       pl.BlockSpec((1, tc, 1), lambda n, c, h: (n, c, 0))),
        ),
        compiler_params=pltpu.CompilerParams(
            dimension_semantics=("parallel", "parallel", "arbitrary"),
            vmem_limit_bytes=vmem_limit,
        ),
        cost_estimate=stats_cost,
    )(x2)

    # Pass 2: fused normalize + affine over the same HW tiles (all axes independent).
    norm_cost = pl.CostEstimate(
        flops=4 * N * C * HW,
        transcendentals=N * C,
        bytes_accessed=(2 * N * C * HW + 2 * N * C + 2 * S * C_pad + N) * 4,
    )
    return pl.pallas_call(
        functools.partial(_norm_kernel, tc, num_ct),
        out_shape=jax.ShapeDtypeStruct((N, C, HW), x2.dtype),
        grid_spec=pltpu.PrefetchScalarGridSpec(
            num_scalar_prefetch=1,
            grid=(N, num_ct, num_ht),
            in_specs=[
                pl.BlockSpec((1, tc, thw), lambda n, c, h, sid: (n, c, h)),
                pl.BlockSpec((1, tc, 1), lambda n, c, h, sid: (n, c, 0)),
                pl.BlockSpec((1, tc, 1), lambda n, c, h, sid: (n, c, 0)),
                pl.BlockSpec((S, C_pad, 1), lambda n, c, h, sid: (0, 0, 0)),  # resident
                pl.BlockSpec((S, C_pad, 1), lambda n, c, h, sid: (0, 0, 0)),  # resident
            ],
            out_specs=pl.BlockSpec((1, tc, thw), lambda n, c, h, sid: (n, c, h)),
        ),
        compiler_params=pltpu.CompilerParams(
            dimension_semantics=("parallel", "parallel", "parallel"),
            vmem_limit_bytes=vmem_limit,
        ),
        cost_estimate=norm_cost,
    )(style_id, x2, mean, var, w3, b3)


# ----------------------------------------------------------------------------- #
# Public wrapper
# ----------------------------------------------------------------------------- #
def batch_instance_norm_2d(x, style_id, weight, bias, *,
                           channel_tile=None, spatial_tile=None):
    """x: [N, C, H, W] f32, style_id: [N] i32, weight/bias: [style_num, C] f32."""
    N, C, H, W = x.shape
    HW = H * W
    x2 = x.reshape(N, C, HW)                 # lane-dense last dim

    tile_budget, vmem_limit = _vmem_budgets()

    if spatial_tile is None:
        tc = channel_tile if channel_tile is not None else \
            _pick_channel_tile(C, HW, tile_budget)
        if tc is not None:
            # v7x megacore: make sure the grid presents >= 2 steps to shard.
            if N * _cdiv(C, tc) < 2 and C > 8:
                tc = min(tc, max(8, ((C + 15) // 16) * 8))
            out = _fused_path(x2, style_id, weight, bias, tc, vmem_limit)
            return out.reshape(N, C, H, W)
        # Even an 8-channel tile with the full H*W blows the budget -> tile H*W.
        spatial_tile = _pick_hw_tile(C, HW, tile_budget)

    out = _two_pass_path(x2, style_id, weight, bias, spatial_tile, vmem_limit)
    return out.reshape(N, C, H, W)


# ----------------------------------------------------------------------------- #
# Pure-JAX reference of the PyTorch module semantics
# ----------------------------------------------------------------------------- #
def _reference(x, style_id, weight, bias):
    mean = jnp.mean(x, axis=(2, 3), keepdims=True)
    var = jnp.mean((x - mean) ** 2, axis=(2, 3), keepdims=True)
    xn = (x - mean) / jnp.sqrt(var + EPS)
    w = weight[style_id][:, :, None, None]
    b = bias[style_id][:, :, None, None]
    return xn * w + b


if __name__ == "__main__":
    key = jax.random.PRNGKey(0)
    kx, kw, kb, ks, kx2 = jax.random.split(key, 5)

    # Case 1: main fused path (N, C, H, W) = (2, 4, 16, 16), 3 styles.
    N, C, H, W, S = 2, 4, 16, 16, 3
    x = jax.random.normal(kx, (N, C, H, W), dtype=jnp.float32)
    weight = 1.0 + 0.1 * jax.random.normal(kw, (S, C), dtype=jnp.float32)
    bias = 0.1 * jax.random.normal(kb, (S, C), dtype=jnp.float32)
    style_id = jax.random.randint(ks, (N,), 0, S, dtype=jnp.int32)

    out = jax.block_until_ready(batch_instance_norm_2d(x, style_id, weight, bias))
    assert out.shape == x.shape
    assert jnp.allclose(out, _reference(x, style_id, weight, bias),
                        atol=1e-4, rtol=1e-4)

    # Case 2: non-divisible channel tiling (C=12 with a forced 8-channel tile).
    C2 = 12
    x_b = jax.random.normal(kx2, (N, C2, H, W), dtype=jnp.float32)
    w_b = 1.0 + 0.1 * jax.random.normal(kw, (S, C2), dtype=jnp.float32)
    b_b = 0.1 * jax.random.normal(kb, (S, C2), dtype=jnp.float32)
    out_b = jax.block_until_ready(
        batch_instance_norm_2d(x_b, style_id, w_b, b_b, channel_tile=8))
    assert jnp.allclose(out_b, _reference(x_b, style_id, w_b, b_b),
                        atol=1e-4, rtol=1e-4)

    # Case 3: forced two-pass HW-tiled fallback with a partial spatial tile
    # (H*W = 384, spatial tile 256) to exercise the tail mask + clipped writes.
    H3, W3 = 16, 24
    x_c = jax.random.normal(kx, (N, C, H3, W3), dtype=jnp.float32)
    out_c = jax.block_until_ready(
        batch_instance_norm_2d(x_c, style_id, weight, bias, spatial_tile=256))
    assert jnp.allclose(out_c, _reference(x_c, style_id, weight, bias),
                        atol=1e-4, rtol=1e-4)

    print("KERNEL_OK")
</pallas_src>

<mosaic_0001>
module attributes {stable_mosaic.version = 11 : i64} {
  func.func @_fused_kernel(%arg0: i32, %arg1: i32, %arg2: memref<2xi32, #tpu.memory_space<smem>>, %arg3: memref<1x4x256xf32, #tpu.memory_space<vmem>>, %arg4: memref<3x4x1xf32, #tpu.memory_space<vmem>>, %arg5: memref<3x4x1xf32, #tpu.memory_space<vmem>>, %arg6: memref<1x4x256xf32, #tpu.memory_space<vmem>>) attributes {dimension_semantics = [#tpu.dimension_semantics<parallel>, #tpu.dimension_semantics<parallel>], iteration_bounds = array<i64: 2, 1>, scalar_prefetch = 1 : i64, scratch_operands = 0 : i64, tpu.core_type = #tpu.core_type<tc>, window_params = [{transform_indices = @transform_0, window_bounds = array<i64: 1, 4, 256>}, {pipeline_mode = #tpu.pipeline_mode<synchronous>, transform_indices = @transform_1, window_bounds = array<i64: 3, 4, 1>}, {pipeline_mode = #tpu.pipeline_mode<synchronous>, transform_indices = @transform_2, window_bounds = array<i64: 3, 4, 1>}, {transform_indices = @transform_3, window_bounds = array<i64: 1, 4, 256>}]} {
    %0 = arith.index_cast %arg0 : i32 to index
    %1 = memref.load %arg2[%0] : memref<2xi32, #tpu.memory_space<smem>>
    %2 = arith.index_cast %1 : i32 to index
    %c0 = arith.constant 0 : index
    %c0_0 = arith.constant 0 : index
    %3 = vector.load %arg4[%2, %c0, %c0_0] : memref<3x4x1xf32, #tpu.memory_space<vmem>>, vector<1x4x1xf32>
    %4 = vector.shape_cast %3 : vector<1x4x1xf32> to vector<4x1xf32>
    %5 = arith.index_cast %1 : i32 to index
    %c0_1 = arith.constant 0 : index
    %c0_2 = arith.constant 0 : index
    %6 = vector.load %arg5[%5, %c0_1, %c0_2] : memref<3x4x1xf32, #tpu.memory_space<vmem>>, vector<1x4x1xf32>
    %7 = vector.shape_cast %6 : vector<1x4x1xf32> to vector<4x1xf32>
    %8 = vector.shape_cast %4 : vector<4x1xf32> to vector<1x4x1xf32>
    %9 = vector.shape_cast %7 : vector<4x1xf32> to vector<1x4x1xf32>
    %c0_3 = arith.constant 0 : index
    %c0_4 = arith.constant 0 : index
    %c0_5 = arith.constant 0 : index
    %10 = vector.load %arg3[%c0_3, %c0_4, %c0_5] : memref<1x4x256xf32, #tpu.memory_space<vmem>>, vector<1x4x256xf32>
    %cst = arith.constant dense<0.000000e+00> : vector<1x4xf32>
    %11 = vector.multi_reduction <add>, %10, %cst [2] : vector<1x4x256xf32> to vector<1x4xf32>
    %12 = vector.shape_cast %11 : vector<1x4xf32> to vector<1x4x1xf32>
    %cst_6 = arith.constant 2.560000e+02 : f32
    %13 = vector.broadcast %cst_6 : f32 to vector<1x4x1xf32>
    %14 = arith.divf %12, %13 : vector<1x4x1xf32>
    %c0_7 = arith.constant 0 : index
    %c0_8 = arith.constant 0 : index
    %c0_9 = arith.constant 0 : index
    %15 = vector.load %arg3[%c0_7, %c0_8, %c0_9] : memref<1x4x256xf32, #tpu.memory_space<vmem>>, vector<1x4x256xf32>
    %16 = vector.broadcast %14 : vector<1x4x1xf32> to vector<1x4x256xf32>
    %17 = arith.subf %15, %16 : vector<1x4x256xf32>
    %18 = arith.mulf %17, %17 : vector<1x4x256xf32>
    %cst_10 = arith.constant dense<0.000000e+00> : vector<1x4xf32>
    %19 = vector.multi_reduction <add>, %18, %cst_10 [2] : vector<1x4x256xf32> to vector<1x4xf32>
    %20 = vector.shape_cast %19 : vector<1x4xf32> to vector<1x4x1xf32>
    %cst_11 = arith.constant 2.560000e+02 : f32
    %21 = vector.broadcast %cst_11 : f32 to vector<1x4x1xf32>
    %22 = arith.divf %20, %21 : vector<1x4x1xf32>
    %cst_12 = arith.constant 9.99999974E-6 : f32
    %23 = vector.broadcast %cst_12 : f32 to vector<1x4x1xf32>
    %24 = arith.addf %22, %23 : vector<1x4x1xf32>
    %25 = math.rsqrt %24 : vector<1x4x1xf32>
    %26 = arith.mulf %25, %8 : vector<1x4x1xf32>
    %c0_13 = arith.constant 0 : index
    %c0_14 = arith.constant 0 : index
    %c0_15 = arith.constant 0 : index
    %27 = vector.load %arg3[%c0_13, %c0_14, %c0_15] : memref<1x4x256xf32, #tpu.memory_space<vmem>>, vector<1x4x256xf32>
    %28 = vector.broadcast %14 : vector<1x4x1xf32> to vector<1x4x256xf32>
    %29 = arith.subf %27, %28 : vector<1x4x256xf32>
    %30 = vector.broadcast %26 : vector<1x4x1xf32> to vector<1x4x256xf32>
    %31 = arith.mulf %29, %30 : vector<1x4x256xf32>
    %32 = vector.broadcast %9 : vector<1x4x1xf32> to vector<1x4x256xf32>
    %33 = arith.addf %31, %32 : vector<1x4x256xf32>
    %c0_16 = arith.constant 0 : index
    %c0_17 = arith.constant 0 : index
    %c0_18 = arith.constant 0 : index
    %34 = vector.load %arg6[%c0_16, %c0_17, %c0_18] : memref<1x4x256xf32, #tpu.memory_space<vmem>>, vector<1x4x256xf32>
    tpu.vector_store %arg6[%c0_16, %c0_17, %c0_18], %33 {strides = array<i32>} : memref<1x4x256xf32, #tpu.memory_space<vmem>>, vector<1x4x256xf32>,
    return
  }
  func.func @transform_0(%arg0: i32, %arg1: i32, %arg2: memref<2xi32, #tpu.memory_space<smem>>) -> (i32, i32, i32) {
    %c0_i32 = arith.constant 0 : i32
    %c0_i32_0 = arith.constant 0 : i32
    return %arg0, %arg1, %c0_i32 : i32, i32, i32
  }
  func.func @transform_1(%arg0: i32, %arg1: i32, %arg2: memref<2xi32, #tpu.memory_space<smem>>) -> (i32, i32, i32) {
    %c0_i32 = arith.constant 0 : i32
    %c0_i32_0 = arith.constant 0 : i32
    %c0_i32_1 = arith.constant 0 : i32
    %c0_i32_2 = arith.constant 0 : i32
    return %c0_i32, %c0_i32_0, %c0_i32_1 : i32, i32, i32
  }
  func.func @transform_2(%arg0: i32, %arg1: i32, %arg2: memref<2xi32, #tpu.memory_space<smem>>) -> (i32, i32, i32) {
    %c0_i32 = arith.constant 0 : i32
    %c0_i32_0 = arith.constant 0 : i32
    %c0_i32_1 = arith.constant 0 : i32
    %c0_i32_2 = arith.constant 0 : i32
    return %c0_i32, %c0_i32_0, %c0_i32_1 : i32, i32, i32
  }
  func.func @transform_3(%arg0: i32, %arg1: i32, %arg2: memref<2xi32, #tpu.memory_space<smem>>) -> (i32, i32, i32) {
    %c0_i32 = arith.constant 0 : i32
    %c0_i32_0 = arith.constant 0 : i32
    return %arg0, %arg1, %c0_i32 : i32, i32, i32
  }
}

</mosaic_0001>

<llo_original>
// kernel: tpu_custom_call.1
$region0: #{tpu_custom_call.1}
  #allocation0 [shape = 'u32[]', space=smem, size = 0x4, offset = 0x4, fixed_abs, tag = 'smem constant byte address 0x4 - core index']
  #allocation1 [shape = 'u32[144,128]{1,0:T(1,128)}', space=vmem, size = 0x12000, scoped, tag = 'internal scratch']
  #allocation2 [shape = 's32[1]{0}', space=sflag, size = 0x4, scoped, tag = 'scoped memory for tpu_custom_call.1']
  #allocation3 [shape = 'u8[512]{0}', space=smem, size = 0x200, scoped, tag = 'prefetched SMEM operand 0']
  %s0 = inlined_call_operand.vmem [shape: s32[2], index: 0, kind: input, shape index: {}]
  %s1 = inlined_call_operand.vmem [shape: f32[2,4,256], index: 1, kind: input, shape index: {}]
  %s2 = inlined_call_operand.vmem [shape: f32[3,4,1], index: 2, kind: input, shape index: {}]
  %s3 = inlined_call_operand.vmem [shape: f32[3,4,1], index: 3, kind: input, shape index: {}]
  %s4 = inlined_call_operand.hbm [shape: f32[2,4,256], index: 4, kind: output, shape index: {}]
  %s5 = sld [smem:[#allocation0]]
  $region45: #{tpu_custom_call.1} parent=0
    _
  %s7 = ssub.s32 1, %s5
  %s8 = scalar_select 0, %s7, %s5
  %s9 = sshll.u32 %s0, 4
  %s10 = int_to_ptr.vmem [resolvable:$true] %s9
  %12 = dma.vmem_to_smem %s10, 16, [#allocation3], [#allocation2]
  %13 = dma.done [#allocation2], 16
  %14 = sfence
  $region1: #{tpu_custom_call.1} parent=0
    #allocation4 [shape = 'u8[8192]{0}', space=vmem, size = 0x2000, scoped, tag = 'output window, operand 0']
    #allocation5 [shape = 's32[2]{0}', space=sflag, size = 0x8, scoped, tag = 'scoped memory for tpu_custom_call.1']
    %15 = vsyncpa [#allocation5], 0
    %s16 = scalar_lea.sflag [#allocation5], 1
    %17 = vsyncpa %s16, 0
    loop: start=0, step=1, limit=4
    $region2: #{tpu_custom_call.1} parent=1 // loop_pre_header
      _
    $region3: #{tpu_custom_call.1} parent=1 // loop_header
      %s19 = sphi 0, %s23
      %p20 = scmp.ge.s32.totalorder %s19, 4
      %s26 = sphi 0, %s38
      %s27 = sphi 0, %s34
      %s28 = sphi 0, %s26
      %s29 = sphi 0, %s27
      %s30 = sphi 0, %s28
      %s31 = sphi 0, %s29
      %s43 = sphi 0, %s45
      %s46 = sphi 0, %s43
      %s47 = sphi 0, %s46
      %s63 = sphi 0, %s47
      %s67 = sphi 0, %s67
      %s69 = sphi 0, %s67
      %s70 = sphi 0, %s69
      %s84 = sphi 0, %s70
      %s88 = sphi 0, %s88
      %s90 = sphi 0, %s88
      %s91 = sphi 0, %s90
      %s105 = sphi 0, %s91
      %s113 = sphi 0, %s115
      %s116 = sphi 0, %s113
      %s117 = sphi 0, %s116
      %s133 = sphi 0, %s117
    $region4: #{tpu_custom_call.1} parent=1 // loop_header_branch
      %22 = sbr.rel (%p20) target = $region8
    $region5: #{tpu_custom_call.1} parent=1 // loop_body
      %s24 = ssub.s32 %s19, 1
      %s25 = ssub.s32 %s19, 2
      %s32 = sadd.s32 1, %s27
      %p33 = scmp.ge.s32.totalorder %s32, 1
      %s34 = scalar_select %p33, 0, %s32
      %s35 = sadd.s32 1, %s26
      %s36 = scalar_select %p33, %s35, %s26
      %p37 = scmp.ge.s32.totalorder %s36, 2
      %s38 = scalar_select %p37, 0, %s36
      %s39 = ssub.s32 %s26, %s38
      %s40 = ssub.s32 %s27, %s34
      %s41 = sor.u32 %s39, %s40
      %p42 = scmp.eq.s32.totalorder %s41, 0
      %s44 = sadd.s32 %s43, 1
      %s45 = scalar_select %p42, %s43, %s44
      %p48 = pneg %p42
      %p49 = scmp.eq.s32.totalorder %s19, 1
      %p50 = por %p48, %p49
      %p51 = scmp.ne.s32.totalorder %s43, %s46
      %p52 = scmp.eq.s32.totalorder %s19, 0
      %p53 = por %p51, %p52
      %p54 = scmp.ne.s32.totalorder %s43, %s46
      %p55 = scmp.eq.s32.totalorder %s24, 1
      %p56 = por %p54, %p55
      %p57 = scmp.ne.s32.totalorder %s46, %s47
      %p58 = scmp.eq.s32.totalorder %s24, 0
      %p59 = por %p57, %p58
      %p60 = scmp.ne.s32.totalorder %s46, %s47
      %p61 = scmp.eq.s32.totalorder %s25, 1
      %p62 = por %p60, %p61
      %p64 = scmp.ne.s32.totalorder %s47, %s63
      %p65 = scmp.eq.s32.totalorder %s25, 0
      %p66 = por %p64, %p65
      %s68 = sadd.s32 %s67, 1
      %p71 = scmp.eq.s32.totalorder %s19, 1
      %p72 = scmp.ne.s32.totalorder %s67, %s69
      %p73 = scmp.eq.s32.totalorder %s19, 0
      %p74 = por %p72, %p73
      %p75 = scmp.ne.s32.totalorder %s67, %s69
      %p76 = scmp.eq.s32.totalorder %s24, 1
      %p77 = por %p75, %p76
      %p78 = scmp.ne.s32.totalorder %s69, %s70
      %p79 = scmp.eq.s32.totalorder %s24, 0
      %p80 = por %p78, %p79
      %p81 = scmp.ne.s32.totalorder %s69, %s70
      %p82 = scmp.eq.s32.totalorder %s25, 1
      %p83 = por %p81, %p82
      %p85 = scmp.ne.s32.totalorder %s70, %s84
      %p86 = scmp.eq.s32.totalorder %s25, 0
      %p87 = por %p85, %p86
      %s89 = sadd.s32 %s88, 1
      %p92 = scmp.eq.s32.totalorder %s19, 1
      %p93 = scmp.ne.s32.totalorder %s88, %s90
      %p94 = scmp.eq.s32.totalorder %s19, 0
      %p95 = por %p93, %p94
      %p96 = scmp.ne.s32.totalorder %s88, %s90
      %p97 = scmp.eq.s32.totalorder %s24, 1
      %p98 = por %p96, %p97
      %p99 = scmp.ne.s32.totalorder %s90, %s91
      %p100 = scmp.eq.s32.totalorder %s24, 0
      %p101 = por %p99, %p100
      %p102 = scmp.ne.s32.totalorder %s90, %s91
      %p103 = scmp.eq.s32.totalorder %s25, 1
      %p104 = por %p102, %p103
      %p106 = scmp.ne.s32.totalorder %s91, %s105
      %p107 = scmp.eq.s32.totalorder %s25, 0
      %p108 = por %p106, %p107
      %s109 = ssub.s32 %s26, %s38
      %s110 = ssub.s32 %s27, %s34
      %s111 = sor.u32 %s109, %s110
      %p112 = scmp.eq.s32.totalorder %s111, 0
      %s114 = sadd.s32 %s113, 1
      %s115 = scalar_select %p112, %s113, %s114
      %p118 = pneg %p112
      %p119 = scmp.eq.s32.totalorder %s19, 1
      %p120 = por %p118, %p119
      %p121 = scmp.ne.s32.totalorder %s113, %s116
      %p122 = scmp.eq.s32.totalorder %s19, 0
      %p123 = por %p121, %p122
      %p124 = scmp.ne.s32.totalorder %s113, %s116
      %p125 = scmp.eq.s32.totalorder %s24, 1
      %p126 = por %p124, %p125
      %p127 = scmp.ne.s32.totalorder %s116, %s117
      %p128 = scmp.eq.s32.totalorder %s24, 0
      %p129 = por %p127, %p128
      %p130 = scmp.ne.s32.totalorder %s116, %s117
      %p131 = scmp.eq.s32.totalorder %s25, 1
      %p132 = por %p130, %p131
      %p134 = scmp.ne.s32.totalorder %s117, %s133
      %p135 = scmp.eq.s32.totalorder %s25, 0
      %p136 = por %p134, %p135
      %p137 = scmp.le.s32.totalorder 1, %s19
      %p138 = scmp.lt.s32.totalorder %s19, 3
      %p139 = pnand %p137, %p138
      %p140 = pneg %p139
      // Predicated region
      $region9: #{tpu_custom_call.1} parent=5 // pred_check
        _
      $region10: #{tpu_custom_call.1} parent=5 // pred_check_branch
        %142 = sbr.rel (%p139) target = $region12
      $region11: #{tpu_custom_call.1} parent=5 // pred_region
        %s143 = ssub.s32 %s19, 1
        // Predicated region
        $region13: #{tpu_custom_call.1} parent=11 // pred_check
          %p144 = pneg %p80
        $region14: #{tpu_custom_call.1} parent=11 // pred_check_branch
          %146 = sbr.rel (%p144) target = $region16
        $region15: #{tpu_custom_call.1} parent=11 // pred_region
          _
        $region16: #{tpu_custom_call.1} parent=11 // pred_fallthru
          _
        // Predicated region
        $region17: #{tpu_custom_call.1} parent=11 // pred_check
          %p147 = pneg %p101
        $region18: #{tpu_custom_call.1} parent=11 // pred_check_branch
          %149 = sbr.rel (%p147) target = $region20
        $region19: #{tpu_custom_call.1} parent=11 // pred_region
          _
        $region20: #{tpu_custom_call.1} parent=11 // pred_fallthru
          _
      $region12: #{tpu_custom_call.1} parent=5 // pred_fallthru
        _
      %p150 = scmp.lt.s32.totalorder %s19, 2
      // Predicated region
      $region21: #{tpu_custom_call.1} parent=5 // pred_check
        %p151 = pneg %p150
      $region22: #{tpu_custom_call.1} parent=5 // pred_check_branch
        %153 = sbr.rel (%p151) target = $region24
      $region23: #{tpu_custom_call.1} parent=5 // pred_region
        // Predicated region
        $region25: #{tpu_custom_call.1} parent=23 // pred_check
          %p154 = pneg %p53
        $region26: #{tpu_custom_call.1} parent=23 // pred_check_branch
          %156 = sbr.rel (%p154) target = $region28
        $region27: #{tpu_custom_call.1} parent=23 // pred_region
          %p157 = scmp.lt.s32.totalorder %s26, 1
          %s158 = scalar_select %p157, %s26, 1
          %p159 = scmp.lt.s32.totalorder %s27, 0
          %s160 = scalar_select %p159, %s27, 0
          %s161 = smul.addr %s160, 2
          %s162 = smul.addr %s158, 2
          %s163 = sadd.s32 %s161, %s162
          %s164 = smul.addr %s163, 4
          %s165 = scalar_lea.vmem %s1, %s164
        $region28: #{tpu_custom_call.1} parent=23 // pred_fallthru
          _
      $region24: #{tpu_custom_call.1} parent=5 // pred_fallthru
        _
      %p166 = scmp.le.s32.totalorder 1, %s19
      %p167 = scmp.lt.s32.totalorder %s19, 3
      %p168 = pnand %p166, %p167
      %p169 = pneg %p168
      // Predicated region
      $region29: #{tpu_custom_call.1} parent=5 // pred_check
        _
      $region30: #{tpu_custom_call.1} parent=5 // pred_check_branch
        %171 = sbr.rel (%p168) target = $region32
      $region31: #{tpu_custom_call.1} parent=5 // pred_region
        %s172 = ssub.s32 %s19, 1
        %p173 = scmp.lt.s32.totalorder %s28, 1
        %s174 = scalar_select %p173, %s28, 1
        %p175 = scmp.lt.s32.totalorder %s29, 0
        %s176 = scalar_select %p175, %s29, 0
        %s177 = smul.addr %s176, 2
        %s178 = smul.addr %s174, 2
        %s179 = sadd.s32 %s177, %s178
        %s180 = smul.addr %s179, 4
        %s181 = scalar_lea.vmem %s1, %s180
        %p182 = pneg %p59
        %p183 = pneg %p56
        %p184 = pneg %p80
        %p185 = pneg %p77
        %p186 = pneg %p101
        %p187 = pneg %p98
        %p188 = pneg %p129
        %p189 = pneg %p126
        %s190 = sand.u32 %s116, 1
        %s191 = scalar_lea.sflag [#allocation5], %s190
        %s192 = sand.u32 %s116, 1
        %s193 = smul.addr %s192, 8
        %s194 = scalar_lea.vmem [#allocation4], %s193
        %p195 = scmp.lt.s32.totalorder %s28, 1
        %s196 = scalar_select %p195, %s28, 1
        %p197 = scmp.lt.s32.totalorder %s29, 0
        %s198 = scalar_select %p197, %s29, 0
        %s199 = smul.addr %s198, 2
        %s200 = smul.addr %s196, 2
        %s201 = sadd.s32 %s199, %s200
        %s202 = smul.addr %s201, 4
        %s203 = scalar_lea.vmem %s1, %s202
        %s204 = sld [smem:[#allocation3 + %s28]]
        %s205 = smul.u32 %s204, 4
        %s206 = scalar_lea.vmem %s2, %s205
        %v207 = vld [vmem:[%s206] sm:$0xf]
        %s208 = scalar_lea.vmem %s3, %s205
        %v209 = vld [vmem:[%s208] sm:$0xf]
        %v210 = vld [vmem:[%s203] sm:$0xff]
        %v212 = vcombine.high %v210, %v210
        %vm214 = vcmask 1043456
        %v215 = vsel %vm214, %v210, 0.0
        %v216 = vsel %vm214, %v212, 0.0
        %v217 = vadd.f32 %v215, %v216
        %218 = vadd.xlane.f32.xlu0 %v217
        %v219 = vpop.xlane.xlu0 %218
        %v220 = vrcp.pop 256.0
        %v221 = vmul.f32 %v219, %v220
        %v224 = vunpack.c.l.s4 839922192
        %v225 = vunpack.c.0.s8 %v224
        %v226 = vlaneseq
        %v227 = vshrl.u32 %v226, 7
        %v228 = vsub.s32 %v225, %v227
        %v229 = vrot.slane %v221, %v228
        %v231 = vsub.f32 %v210, %v229
        %v232 = vmul.f32 %v231, %v231
        %v234 = vcombine.high %v232, %v232
        %v236 = vsel %vm214, %v232, 0.0
        %v237 = vsel %vm214, %v234, 0.0
        %v238 = vadd.f32 %v236, %v237
        %239 = vadd.xlane.f32.xlu0 %v238
        %v240 = vpop.xlane.xlu0 %239
        %v241 = vmul.f32 %v240, %v220
        %v242 = vadd.f32 %v241, 1e-05
        %v243 = vrsqrt.pop %v242
        %v244 = vmul.f32 %v243, %v207
        %246 = vset.pattern.permute.xlu0 0
        %247 = vperm.xlu0 %246, %v244
        %v248 = vpop.permute.xlu0 %247
        %v250 = vunpack.c.l.s4 839922192
        %v251 = vunpack.c.0.s8 %v250
        %v252 = vlaneseq
        %v253 = vshrl.u32 %v252, 7
        %v254 = vsub.s32 %v251, %v253
        %v255 = vrot.slane %v248, %v254
        %v257 = vmul.f32 %v231, %v255
        %259 = vset.pattern.permute.xlu0 0
        %260 = vperm.xlu0 %259, %v209
        %v261 = vpop.permute.xlu0 %260
        %v263 = vunpack.c.l.s4 839922192
        %v264 = vunpack.c.0.s8 %v263
        %v265 = vlaneseq
        %v266 = vshrl.u32 %v265, 7
        %v267 = vsub.s32 %v264, %v266
        %v268 = vrot.slane %v261, %v267
        %v270 = vadd.f32 %v257, %v268
        %271 = vst [vmem:[%s194] sm:$0xff] %v270
        %s272 = sand.u32 %s116, 1
        %s273 = scalar_lea.sflag [#allocation5], %s272
        %s274 = sand.u32 %s116, 1
        %s275 = smul.addr %s274, 8
        %s276 = scalar_lea.vmem [#allocation4], %s275
        // Predicated region
        $region33: #{tpu_custom_call.1} parent=31 // pred_check
          %p277 = pneg %p126
        $region34: #{tpu_custom_call.1} parent=31 // pred_check_branch
          %279 = sbr.rel (%p277) target = $region36
        $region35: #{tpu_custom_call.1} parent=31 // pred_region
          %s281 = ssub.s32 128, 128
          %282 = vsyncadd %s273, %s281
          %s283 = smul.addr %s29, 2
          %s284 = smul.addr %s28, 2
          %s285 = sadd.s32 %s283, %s284
          %s286 = smul.addr %s285, 64
          %s287 = scalar_lea.hbm %s4, %s286
          %s289 = sshll.u32 %s276, 4
          %s290 = int_to_ptr.vmem [resolvable:$true] %s289
          %292 = dma.vmem_to_hbm [thread:$0]  %s290, 128, %s287, %s273
        $region36: #{tpu_custom_call.1} parent=31 // pred_fallthru
          _
      $region32: #{tpu_custom_call.1} parent=5 // pred_fallthru
        _
      %p293 = scmp.le.s32.totalorder 2, %s19
      // Predicated region
      $region37: #{tpu_custom_call.1} parent=5 // pred_check
        %p294 = pneg %p293
      $region38: #{tpu_custom_call.1} parent=5 // pred_check_branch
        %296 = sbr.rel (%p294) target = $region40
      $region39: #{tpu_custom_call.1} parent=5 // pred_region
        %s297 = ssub.s32 %s19, 2
        // Predicated region
        $region41: #{tpu_custom_call.1} parent=39 // pred_check
          %p298 = pneg %p132
        $region42: #{tpu_custom_call.1} parent=39 // pred_check_branch
          %300 = sbr.rel (%p298) target = $region44
        $region43: #{tpu_custom_call.1} parent=39 // pred_region
          %s301 = sand.u32 %s117, 1
          %s302 = scalar_lea.sflag [#allocation5], %s301
          %s303 = sand.u32 %s117, 1
          %s304 = smul.addr %s303, 8
          %s305 = scalar_lea.vmem [#allocation4], %s304
          %306 = dma.done %s302, 128
        $region44: #{tpu_custom_call.1} parent=39 // pred_fallthru
          _
      $region40: #{tpu_custom_call.1} parent=5 // pred_fallthru
        _
    $region6: #{tpu_custom_call.1} parent=1 // loop_footer
      %s23 = sadd.s32 1, %s19
    $region7: #{tpu_custom_call.1} parent=1 // loop_footer_branch
      %18 = sbr.rel target = $region3
    $region8: #{tpu_custom_call.1} parent=1 // loop_exit
      _
    %307 = vsyncpa [#allocation5], 1
    %s308 = scalar_lea.sflag [#allocation5], 1
    %309 = vsyncpa %s308, 1

</llo_original>
